<compile_context>
chip_gen: v7x
topology: tpu7x:2x2x1
jax: 0.10.0
libtpu: 0.0.40
codegen_flags: <defaults>
</compile_context>

<pallas_src>
import types

import jax
import jax.numpy as jnp
from jax.experimental import pallas as pl
from jax.experimental.pallas import tpu as pltpu


# ------------------------------ helpers ----------------------------------- #
def _round_up(x, m):
    return (x + m - 1) // m * m


# Below this per-row burst size the strided "fused CLS gather" DMA underuses
# HBM bandwidth; prefer a contiguous CLS slab instead.
_MIN_FUSED_BURST_BYTES = 2048

# Double-buffered x-stream VMEM budget used to size the batch tile.  Total
# requirement (x + weights + bias + output, all double-buffered) stays well
# under v7x's 64 MiB physical VMEM; the exact need is passed via
# vmem_limit_bytes so per-generation scoped-VMEM defaults don't bind.
_X_STREAM_BUDGET = 24 * 1024 * 1024


def _pick_batch_tile(batch, bytes_per_row, row_align, max_batch_tile=None):
    """Largest row tile (multiple of row_align) whose double-buffered x-stream
    fits _X_STREAM_BUDGET, capped at ceil(batch/2) so a megacore chip (v7x)
    always gets >= 2 grid steps to split across its two TensorCores."""
    tile = row_align
    for t in (4096, 2048, 1024, 512, 256, 128, 64, 32, 16):
        if t % row_align == 0 and 2 * t * bytes_per_row <= _X_STREAM_BUDGET:
            tile = t
            break
    if batch >= 2 * row_align:
        tile = min(tile, _round_up(pl.cdiv(batch, 2), row_align))
    if max_batch_tile is not None:
        tile = min(tile, max(row_align, (max_batch_tile // row_align) * row_align))
    if batch <= tile:
        # Single block covering the whole batch dim (always a legal block).
        return batch
    return tile


def _cls_2d(features):
    """Return (x2d, H) where the first H columns of x2d are the CLS token.

    Fast path (H lane-aligned and per-row burst >= 2 KiB): free reshape
    (B, S, H) -> (B, S*H); the kernel BlockSpec reads column block 0 of width
    H, fusing the CLS gather into the input DMA (no (B, H) copy in HBM).

    Fallback (small H or unaligned H): materialize features[:, 0, :]
    contiguously, which the kernel then reads with full-width bursts.
    TODO(synk): for small H this slab should ideally come fused out of the
    encoder epilogue / a CLS-contiguous producer layout instead of a copy here.
    """
    B, S, H = features.shape
    itemsize = jnp.dtype(features.dtype).itemsize
    if S == 1:
        return features.reshape(B, H), H
    if H % 128 == 0 and H * itemsize >= _MIN_FUSED_BURST_BYTES:
        return features.reshape(B, S * H), H
    return features[:, 0, :], H


# ----------------------------- Pallas kernel ------------------------------ #
def _make_head_kernel(n_inputs, precision):
    """Kernel computing o = sum_i x_i @ W_i + bias on one batch tile
    (float32 accumulator and bias epilogue, cast on the final store)."""

    def kernel(*refs):
        x_refs = refs[:n_inputs]
        w_refs = refs[n_inputs:2 * n_inputs]
        bias_ref = refs[2 * n_inputs]
        o_ref = refs[2 * n_inputs + 1]

        acc = jnp.dot(x_refs[0][...], w_refs[0][...],
                      preferred_element_type=jnp.float32, precision=precision)
        for xr, wr in zip(x_refs[1:], w_refs[1:]):
            acc = acc + jnp.dot(xr[...], wr[...],
                                preferred_element_type=jnp.float32,
                                precision=precision)
        o_ref[...] = (acc + bias_ref[...]).astype(o_ref.dtype)

    return kernel


def matching_head(cls_views, weights_t, bias_row, n_classes, *,
                  out_dtype=None, precision=None, max_batch_tile=None,
                  return_padded=False):
    """logits = concat_i(cls_i) @ concat_i(W_i) + bias, tiled over batch.

    cls_views : list of (x2d, H) pairs from _cls_2d; the first H columns of
                each x2d are that input's CLS features.
    weights_t : list of (H_i, C_pad) weight slabs (transposed, lane-padded),
                same dtype as the x stream (bf16 or f32).
    bias_row  : (1, C_pad) float32.
    """
    n_in = len(cls_views)
    x_list = [x for (x, _) in cls_views]
    widths = [h for (_, h) in cls_views]
    B = x_list[0].shape[0]
    C_pad = bias_row.shape[1]
    hin = sum(widths)

    x_dtype = x_list[0].dtype
    x_itemsize = jnp.dtype(x_dtype).itemsize
    if out_dtype is None:
        out_dtype = x_dtype
    out_itemsize = jnp.dtype(out_dtype).itemsize

    # bf16 packs two rows per sublane -> 16-row alignment; f32 -> 8.
    row_align = 16 if x_itemsize == 2 else 8
    b_tile = _pick_batch_tile(B, hin * x_itemsize, row_align, max_batch_tile)
    grid = (pl.cdiv(B, b_tile),)

    in_specs = []
    for h in widths:
        # Column block 0 of width h == the CLS slab for this batch tile.
        in_specs.append(pl.BlockSpec((b_tile, h), lambda i: (i, 0)))
    for w in weights_t:
        # Constant index_map -> the weight block stays VMEM-resident across
        # grid steps.  TODO(synk): pipeline_mode=pl.Buffered(1) would drop the
        # redundant second buffer for these never-changing blocks; omitted to
        # stay conservative (VMEM headroom is already large at these sizes).
        in_specs.append(pl.BlockSpec(w.shape, lambda i: (0, 0)))
    in_specs.append(pl.BlockSpec((1, C_pad), lambda i: (0, 0)))
    out_specs = pl.BlockSpec((b_tile, C_pad), lambda i: (i, 0))

    # Explicit scoped-VMEM limit derived from the actual (double-buffered)
    # buffer sizes, so tile choice doesn't depend on per-generation defaults
    # (v5e 16 MiB / v6e 32 MiB / v7x 32 MiB scoped, 64 MiB physical).
    w_bytes = sum(int(w.size) * jnp.dtype(w.dtype).itemsize for w in weights_t)
    need = (2 * b_tile * hin * x_itemsize          # x tiles (double-buffered)
            + 2 * w_bytes                          # weight slabs
            + 2 * 8 * C_pad * 4                    # bias (sublane-padded)
            + 2 * b_tile * C_pad * out_itemsize)   # output tiles
    vmem_limit = None
    if need > 12 * 1024 * 1024:
        vmem_limit = min(int(need * 1.25) + (2 << 20), 48 * 1024 * 1024)

    cost = pl.CostEstimate(
        flops=2 * B * hin * C_pad,
        transcendentals=0,
        bytes_accessed=(B * hin * x_itemsize + w_bytes + C_pad * 4
                        + B * C_pad * out_itemsize),
    )

    out = pl.pallas_call(
        _make_head_kernel(n_in, precision),
        out_shape=jax.ShapeDtypeStruct((B, C_pad), out_dtype),
        grid=grid,
        in_specs=in_specs,
        out_specs=out_specs,
        compiler_params=pltpu.CompilerParams(
            dimension_semantics=("parallel",),
            vmem_limit_bytes=vmem_limit,
        ),
        cost_estimate=cost,
    )(*x_list, *weights_t, bias_row)

    if return_padded:
        # Let the downstream consumer (loss / softmax) do the [:, :n_classes]
        # slice where XLA fuses it, instead of an extra read+write pass here.
        return out
    return out[:, :n_classes]


# --------------------------- Module equivalent ----------------------------- #
class MatchingModuleJax:
    """JAX/Pallas equivalent of the PyTorch MatchingModule forward pass."""

    def __init__(self, config, task_name, n_classes, key, *,
                 max_batch_tile=None, precision=None):
        self.config = config
        self.task_name = task_name
        self.n_classes = 1 if config.regression else n_classes
        self.max_batch_tile = max_batch_tile
        self.precision = precision  # e.g. jax.lax.Precision.HIGHEST for exact f32

        hidden = config.hidden_size
        in_features = hidden * 2 if config.ir_siamese else hidden

        # nn.Linear-style init: U(-1/sqrt(fan_in), 1/sqrt(fan_in)).
        kw, kb = jax.random.split(key)
        bound = 1.0 / (in_features ** 0.5)
        weight_t = jax.random.uniform(
            kw, (in_features, self.n_classes), jnp.float32, -bound, bound)
        bias = jax.random.uniform(
            kb, (self.n_classes,), jnp.float32, -bound, bound)

        # Pad the class (lane) dim to 128 once, at init.
        self.c_pad = _round_up(max(self.n_classes, 1), 128)
        wt_p = jnp.zeros((in_features, self.c_pad), jnp.float32)
        wt_p = wt_p.at[:, : self.n_classes].set(weight_t)
        self.bias_row = jnp.zeros((1, self.c_pad), jnp.float32)
        self.bias_row = self.bias_row.at[:, : self.n_classes].set(bias)

        if config.ir_siamese:
            # Split so cat([a_cls, b_cls]) never has to be materialized.
            slabs = [wt_p[:hidden], wt_p[hidden:]]
        else:
            slabs = [wt_p]
        # Weight slabs in both stream precisions; the call picks the one that
        # matches the incoming feature dtype (no whole-tensor feature casts).
        self._weights = {
            jnp.dtype(jnp.float32): slabs,
            jnp.dtype(jnp.bfloat16): [w.astype(jnp.bfloat16) for w in slabs],
        }

        # Unpadded copies for reference checking.
        self.weight_t = weight_t
        self.bias = bias

    def _weights_for(self, dtype):
        return self._weights.get(jnp.dtype(dtype),
                                 self._weights[jnp.dtype(jnp.float32)])

    def __call__(self, return_padded=False, **kwargs):
        if self.config.ir_siamese:
            a_features = kwargs.pop("a_features")  # (B, S, H)
            b_features = kwargs.pop("b_features")  # (B, S, H)
            cls_views = [_cls_2d(a_features), _cls_2d(b_features)]
        else:
            features = kwargs.pop("features")      # (B, S, H)
            cls_views = [_cls_2d(features)]
        x_dtype = cls_views[0][0].dtype
        return matching_head(cls_views, self._weights_for(x_dtype),
                             self.bias_row, self.n_classes,
                             precision=self.precision,
                             max_batch_tile=self.max_batch_tile,
                             return_padded=return_padded)


# --------------------------------- Main ------------------------------------ #
if __name__ == "__main__":
    key = jax.random.PRNGKey(0)
    k1, k2, k3, ka, kb, kc, kd, ke = jax.random.split(key, 8)
    n_classes = 3

    # ---- 1) siamese, f32, ragged batch (B=20, tile 16 -> 2 grid steps),
    #         fused strided CLS DMA (H=512 -> 2 KiB row bursts). ----
    B, S, H = 20, 8, 512
    cfg_s = types.SimpleNamespace(regression=False, ir_siamese=True,
                                  hidden_size=H)
    mod_s = MatchingModuleJax(cfg_s, "matching", n_classes, k1,
                              max_batch_tile=16)
    a = jax.random.normal(ka, (B, S, H), jnp.float32)
    b = jax.random.normal(kb, (B, S, H), jnp.float32)

    logits_s = jax.block_until_ready(mod_s(a_features=a, b_features=b))
    x_ref = jnp.concatenate([a[:, 0], b[:, 0]], axis=-1)
    ref_s = jnp.dot(x_ref, mod_s.weight_t,
                    precision=jax.lax.Precision.HIGHEST) + mod_s.bias
    assert logits_s.shape == (B, n_classes)
    assert jnp.allclose(logits_s, ref_s, atol=1e-2, rtol=1e-2), "siamese f32"

    # padded-output variant (consumer-side slice)
    padded = jax.block_until_ready(
        mod_s(a_features=a, b_features=b, return_padded=True))
    assert padded.shape == (B, mod_s.c_pad)
    assert jnp.allclose(padded[:, :n_classes], logits_s)

    # ---- 2) non-siamese, f32, small H (contiguous CLS fallback path). ----
    B2, S2, H2 = 2, 8, 128
    cfg_n = types.SimpleNamespace(regression=False, ir_siamese=False,
                                  hidden_size=H2)
    mod_n = MatchingModuleJax(cfg_n, "matching", n_classes, k2)
    f = jax.random.normal(kc, (B2, S2, H2), jnp.float32)

    logits_n = jax.block_until_ready(mod_n(features=f))
    ref_n = jnp.dot(f[:, 0], mod_n.weight_t,
                    precision=jax.lax.Precision.HIGHEST) + mod_n.bias
    assert logits_n.shape == (B2, n_classes)
    assert jnp.allclose(logits_n, ref_n, atol=1e-2, rtol=1e-2), "non-siamese f32"

    # ---- 3) siamese, bf16 feature stream (bf16 weights, f32 accumulate). ----
    B3, S3, H3 = 16, 4, 256
    cfg_b = types.SimpleNamespace(regression=False, ir_siamese=True,
                                  hidden_size=H3)
    mod_b = MatchingModuleJax(cfg_b, "matching", n_classes, k3)
    a3 = jax.random.normal(kd, (B3, S3, H3), jnp.float32).astype(jnp.bfloat16)
    b3 = jax.random.normal(ke, (B3, S3, H3), jnp.float32).astype(jnp.bfloat16)

    logits_b = jax.block_until_ready(mod_b(a_features=a3, b_features=b3))
    assert logits_b.dtype == jnp.bfloat16
    x3 = jnp.concatenate([a3[:, 0], b3[:, 0]], axis=-1).astype(jnp.float32)
    w3 = mod_b.weight_t.astype(jnp.bfloat16).astype(jnp.float32)
    ref_b = jnp.dot(x3, w3, precision=jax.lax.Precision.HIGHEST) + mod_b.bias
    assert logits_b.shape == (B3, n_classes)
    assert jnp.allclose(logits_b.astype(jnp.float32), ref_b,
                        atol=2e-2, rtol=2e-2), "siamese bf16"

    print("KERNEL_OK")
</pallas_src>

<mosaic_0001>
module attributes {stable_mosaic.version = 11 : i64} {
  func.func @kernel(%arg0: i32, %arg1: memref<16x512xf32, #tpu.memory_space<vmem>>, %arg2: memref<16x512xf32, #tpu.memory_space<vmem>>, %arg3: memref<512x128xf32, #tpu.memory_space<vmem>>, %arg4: memref<512x128xf32, #tpu.memory_space<vmem>>, %arg5: memref<1x128xf32, #tpu.memory_space<vmem>>, %arg6: memref<16x128xf32, #tpu.memory_space<vmem>>) attributes {dimension_semantics = [#tpu.dimension_semantics<parallel>], iteration_bounds = array<i64: 2>, scalar_prefetch = 0 : i64, scratch_operands = 0 : i64, tpu.core_type = #tpu.core_type<tc>, window_params = [{transform_indices = @transform_0, window_bounds = array<i64: 16, 512>}, {transform_indices = @transform_1, window_bounds = array<i64: 16, 512>}, {pipeline_mode = #tpu.pipeline_mode<synchronous>, transform_indices = @transform_2, window_bounds = array<i64: 512, 128>}, {pipeline_mode = #tpu.pipeline_mode<synchronous>, transform_indices = @transform_3, window_bounds = array<i64: 512, 128>}, {pipeline_mode = #tpu.pipeline_mode<synchronous>, transform_indices = @transform_4, window_bounds = array<i64: 1, 128>}, {transform_indices = @transform_5, window_bounds = array<i64: 16, 128>}]} {
    %c0 = arith.constant 0 : index
    %c0_0 = arith.constant 0 : index
    %0 = vector.load %arg1[%c0, %c0_0] : memref<16x512xf32, #tpu.memory_space<vmem>>, vector<16x512xf32>
    %c0_1 = arith.constant 0 : index
    %c0_2 = arith.constant 0 : index
    %1 = vector.load %arg3[%c0_1, %c0_2] : memref<512x128xf32, #tpu.memory_space<vmem>>, vector<512x128xf32>
    %cst = arith.constant dense<0.000000e+00> : vector<16x128xf32>
    %2 = tpu.matmul %0, %1, %cst {dimension_numbers = #tpu.dot_dimension_numbers<[1], [0], [0], [1], [0, 0, 1, 1], [], []>} : vector<16x512xf32>, vector<512x128xf32>, vector<16x128xf32> -> vector<16x128xf32>
    %c0_3 = arith.constant 0 : index
    %c0_4 = arith.constant 0 : index
    %3 = vector.load %arg2[%c0_3, %c0_4] : memref<16x512xf32, #tpu.memory_space<vmem>>, vector<16x512xf32>
    %c0_5 = arith.constant 0 : index
    %c0_6 = arith.constant 0 : index
    %4 = vector.load %arg4[%c0_5, %c0_6] : memref<512x128xf32, #tpu.memory_space<vmem>>, vector<512x128xf32>
    %cst_7 = arith.constant dense<0.000000e+00> : vector<16x128xf32>
    %5 = tpu.matmul %3, %4, %cst_7 {dimension_numbers = #tpu.dot_dimension_numbers<[1], [0], [0], [1], [0, 0, 1, 1], [], []>} : vector<16x512xf32>, vector<512x128xf32>, vector<16x128xf32> -> vector<16x128xf32>
    %6 = arith.addf %2, %5 : vector<16x128xf32>
    %c0_8 = arith.constant 0 : index
    %c0_9 = arith.constant 0 : index
    %7 = vector.load %arg5[%c0_8, %c0_9] : memref<1x128xf32, #tpu.memory_space<vmem>>, vector<1x128xf32>
    %8 = vector.broadcast %7 : vector<1x128xf32> to vector<16x128xf32>
    %9 = arith.addf %6, %8 : vector<16x128xf32>
    %c0_10 = arith.constant 0 : index
    %c0_11 = arith.constant 0 : index
    %10 = vector.load %arg6[%c0_10, %c0_11] : memref<16x128xf32, #tpu.memory_space<vmem>>, vector<16x128xf32>
    tpu.vector_store %arg6[%c0_10, %c0_11], %9 {strides = array<i32>} : memref<16x128xf32, #tpu.memory_space<vmem>>, vector<16x128xf32>,
    return
  }
  func.func @transform_0(%arg0: i32) -> (i32, i32) {
    %c0_i32 = arith.constant 0 : i32
    %c0_i32_0 = arith.constant 0 : i32
    return %arg0, %c0_i32 : i32, i32
  }
  func.func @transform_1(%arg0: i32) -> (i32, i32) {
    %c0_i32 = arith.constant 0 : i32
    %c0_i32_0 = arith.constant 0 : i32
    return %arg0, %c0_i32 : i32, i32
  }
  func.func @transform_2(%arg0: i32) -> (i32, i32) {
    %c0_i32 = arith.constant 0 : i32
    %c0_i32_0 = arith.constant 0 : i32
    %c0_i32_1 = arith.constant 0 : i32
    return %c0_i32, %c0_i32_0 : i32, i32
  }
  func.func @transform_3(%arg0: i32) -> (i32, i32) {
    %c0_i32 = arith.constant 0 : i32
    %c0_i32_0 = arith.constant 0 : i32
    %c0_i32_1 = arith.constant 0 : i32
    return %c0_i32, %c0_i32_0 : i32, i32
  }
  func.func @transform_4(%arg0: i32) -> (i32, i32) {
    %c0_i32 = arith.constant 0 : i32
    %c0_i32_0 = arith.constant 0 : i32
    %c0_i32_1 = arith.constant 0 : i32
    return %c0_i32, %c0_i32_0 : i32, i32
  }
  func.func @transform_5(%arg0: i32) -> (i32, i32) {
    %c0_i32 = arith.constant 0 : i32
    %c0_i32_0 = arith.constant 0 : i32
    return %arg0, %c0_i32 : i32, i32
  }
}

</mosaic_0001>

<llo_original>
// kernel: tpu_custom_call.1
$region0: #{tpu_custom_call.1}
  #allocation0 [shape = 'u32[]', space=smem, size = 0x4, offset = 0x4, fixed_abs, tag = 'smem constant byte address 0x4 - core index']
  #allocation1 [shape = 'u32[144,128]{1,0:T(1,128)}', space=vmem, size = 0x12000, scoped, tag = 'internal scratch']
  %s0 = inlined_call_operand.hbm [shape: f32[20,4096], index: 0, kind: input, shape index: {}]
  %s1 = inlined_call_operand.hbm [shape: f32[20,4096], index: 1, kind: input, shape index: {}]
  %s2 = inlined_call_operand.hbm [shape: f32[512,128], index: 2, kind: input, shape index: {}]
  %s3 = inlined_call_operand.hbm [shape: f32[512,128], index: 3, kind: input, shape index: {}]
  %s4 = inlined_call_operand.vmem [shape: f32[1,128], index: 4, kind: input, shape index: {}]
  %s5 = inlined_call_operand.hbm [shape: f32[20,128], index: 5, kind: output, shape index: {}]
  %s6 = sld [smem:[#allocation0]]
  $region69: #{tpu_custom_call.1} parent=0
    _
  %s8 = ssub.s32 1, %s6
  %s9 = scalar_select 0, %s8, %s6
  $region1: #{tpu_custom_call.1} parent=0
    #allocation2 [shape = 'u8[65536]{0}', space=vmem, size = 0x10000, scoped, tag = 'input window, operand 0']
    #allocation3 [shape = 's32[2]{0}', space=sflag, size = 0x8, scoped, tag = 'scoped memory for tpu_custom_call.1']
    #allocation4 [shape = 's32[2]{0}', space=sflag, size = 0x8, scoped, tag = 'scoped memory for tpu_custom_call.1']
    #allocation5 [shape = 'u8[65536]{0}', space=vmem, size = 0x10000, scoped, tag = 'input window, operand 1']
    #allocation6 [shape = 's32[2]{0}', space=sflag, size = 0x8, scoped, tag = 'scoped memory for tpu_custom_call.1']
    #allocation7 [shape = 'u8[262144]{0}', space=vmem, size = 0x40000, scoped, tag = 'input window, operand 2, single buffered']
    #allocation8 [shape = 'u8[262144]{0}', space=vmem, size = 0x40000, scoped, tag = 'input window, operand 3, single buffered']
    #allocation9 [shape = 's32[1]{0}', space=sflag, size = 0x4, scoped, tag = 'scoped memory for tpu_custom_call.1']
    #allocation10 [shape = 'u8[16384]{0}', space=vmem, size = 0x4000, scoped, tag = 'output window, operand 0']
    %10 = vsyncpa [#allocation3], 0
    %s11 = scalar_lea.sflag [#allocation3], 1
    %12 = vsyncpa %s11, 0
    %13 = vsyncpa [#allocation6], 0
    %s14 = scalar_lea.sflag [#allocation6], 1
    %15 = vsyncpa %s14, 0
    %16 = vsyncpa [#allocation9], 0
    %17 = vsyncpa [#allocation4], 0
    %s18 = scalar_lea.sflag [#allocation4], 1
    %19 = vsyncpa %s18, 0
    loop: start=0, step=1, limit=4
    $region2: #{tpu_custom_call.1} parent=1 // loop_pre_header
      _
    $region3: #{tpu_custom_call.1} parent=1 // loop_header
      %s21 = sphi 0, %s25
      %p22 = scmp.ge.s32.totalorder %s21, 4
      %s31 = sphi 0, %s33
      %s34 = sphi 0, %s31
      %s35 = sphi 0, %s34
      %s51 = sphi 0, %s35
      %s57 = sphi 0, %s59
      %s60 = sphi 0, %s57
      %s61 = sphi 0, %s60
      %s77 = sphi 0, %s61
      %s81 = sphi 0, %s81
      %s83 = sphi 0, %s81
      %s84 = sphi 0, %s83
      %s98 = sphi 0, %s84
      %s102 = sphi 0, %s102
      %s104 = sphi 0, %s102
      %s105 = sphi 0, %s104
      %s119 = sphi 0, %s105
      %s123 = sphi 0, %s123
      %s125 = sphi 0, %s123
      %s126 = sphi 0, %s125
      %s140 = sphi 0, %s126
      %s146 = sphi 0, %s148
      %s149 = sphi 0, %s146
      %s150 = sphi 0, %s149
      %s166 = sphi 0, %s150
    $region4: #{tpu_custom_call.1} parent=1 // loop_header_branch
      %24 = sbr.rel (%p22) target = $region8
    $region5: #{tpu_custom_call.1} parent=1 // loop_body
      %s26 = ssub.s32 %s21, 1
      %s27 = ssub.s32 %s21, 2
      %s28 = sadd.s32 %s21, 1
      %s29 = ssub.s32 %s21, %s28
      %p30 = scmp.eq.s32.totalorder %s29, 0
      %s32 = sadd.s32 %s31, 1
      %s33 = scalar_select %p30, %s31, %s32
      %p36 = pneg %p30
      %p37 = scmp.eq.s32.totalorder %s21, 1
      %p38 = por %p36, %p37
      %p39 = scmp.ne.s32.totalorder %s31, %s34
      %p40 = scmp.eq.s32.totalorder %s21, 0
      %p41 = por %p39, %p40
      %p42 = scmp.ne.s32.totalorder %s31, %s34
      %p43 = scmp.eq.s32.totalorder %s26, 1
      %p44 = por %p42, %p43
      %p45 = scmp.ne.s32.totalorder %s34, %s35
      %p46 = scmp.eq.s32.totalorder %s26, 0
      %p47 = por %p45, %p46
      %p48 = scmp.ne.s32.totalorder %s34, %s35
      %p49 = scmp.eq.s32.totalorder %s27, 1
      %p50 = por %p48, %p49
      %p52 = scmp.ne.s32.totalorder %s35, %s51
      %p53 = scmp.eq.s32.totalorder %s27, 0
      %p54 = por %p52, %p53
      %s55 = ssub.s32 %s21, %s28
      %p56 = scmp.eq.s32.totalorder %s55, 0
      %s58 = sadd.s32 %s57, 1
      %s59 = scalar_select %p56, %s57, %s58
      %p62 = pneg %p56
      %p63 = scmp.eq.s32.totalorder %s21, 1
      %p64 = por %p62, %p63
      %p65 = scmp.ne.s32.totalorder %s57, %s60
      %p66 = scmp.eq.s32.totalorder %s21, 0
      %p67 = por %p65, %p66
      %p68 = scmp.ne.s32.totalorder %s57, %s60
      %p69 = scmp.eq.s32.totalorder %s26, 1
      %p70 = por %p68, %p69
      %p71 = scmp.ne.s32.totalorder %s60, %s61
      %p72 = scmp.eq.s32.totalorder %s26, 0
      %p73 = por %p71, %p72
      %p74 = scmp.ne.s32.totalorder %s60, %s61
      %p75 = scmp.eq.s32.totalorder %s27, 1
      %p76 = por %p74, %p75
      %p78 = scmp.ne.s32.totalorder %s61, %s77
      %p79 = scmp.eq.s32.totalorder %s27, 0
      %p80 = por %p78, %p79
      %s82 = sadd.s32 %s81, 1
      %p85 = scmp.eq.s32.totalorder %s21, 1
      %p86 = scmp.ne.s32.totalorder %s81, %s83
      %p87 = scmp.eq.s32.totalorder %s21, 0
      %p88 = por %p86, %p87
      %p89 = scmp.ne.s32.totalorder %s81, %s83
      %p90 = scmp.eq.s32.totalorder %s26, 1
      %p91 = por %p89, %p90
      %p92 = scmp.ne.s32.totalorder %s83, %s84
      %p93 = scmp.eq.s32.totalorder %s26, 0
      %p94 = por %p92, %p93
      %p95 = scmp.ne.s32.totalorder %s83, %s84
      %p96 = scmp.eq.s32.totalorder %s27, 1
      %p97 = por %p95, %p96
      %p99 = scmp.ne.s32.totalorder %s84, %s98
      %p100 = scmp.eq.s32.totalorder %s27, 0
      %p101 = por %p99, %p100
      %s103 = sadd.s32 %s102, 1
      %p106 = scmp.eq.s32.totalorder %s21, 1
      %p107 = scmp.ne.s32.totalorder %s102, %s104
      %p108 = scmp.eq.s32.totalorder %s21, 0
      %p109 = por %p107, %p108
      %p110 = scmp.ne.s32.totalorder %s102, %s104
      %p111 = scmp.eq.s32.totalorder %s26, 1
      %p112 = por %p110, %p111
      %p113 = scmp.ne.s32.totalorder %s104, %s105
      %p114 = scmp.eq.s32.totalorder %s26, 0
      %p115 = por %p113, %p114
      %p116 = scmp.ne.s32.totalorder %s104, %s105
      %p117 = scmp.eq.s32.totalorder %s27, 1
      %p118 = por %p116, %p117
      %p120 = scmp.ne.s32.totalorder %s105, %s119
      %p121 = scmp.eq.s32.totalorder %s27, 0
      %p122 = por %p120, %p121
      %s124 = sadd.s32 %s123, 1
      %p127 = scmp.eq.s32.totalorder %s21, 1
      %p128 = scmp.ne.s32.totalorder %s123, %s125
      %p129 = scmp.eq.s32.totalorder %s21, 0
      %p130 = por %p128, %p129
      %p131 = scmp.ne.s32.totalorder %s123, %s125
      %p132 = scmp.eq.s32.totalorder %s26, 1
      %p133 = por %p131, %p132
      %p134 = scmp.ne.s32.totalorder %s125, %s126
      %p135 = scmp.eq.s32.totalorder %s26, 0
      %p136 = por %p134, %p135
      %p137 = scmp.ne.s32.totalorder %s125, %s126
      %p138 = scmp.eq.s32.totalorder %s27, 1
      %p139 = por %p137, %p138
      %p141 = scmp.ne.s32.totalorder %s126, %s140
      %p142 = scmp.eq.s32.totalorder %s27, 0
      %p143 = por %p141, %p142
      %s144 = ssub.s32 %s21, %s28
      %p145 = scmp.eq.s32.totalorder %s144, 0
      %s147 = sadd.s32 %s146, 1
      %s148 = scalar_select %p145, %s146, %s147
      %p151 = pneg %p145
      %p152 = scmp.eq.s32.totalorder %s21, 1
      %p153 = por %p151, %p152
      %p154 = scmp.ne.s32.totalorder %s146, %s149
      %p155 = scmp.eq.s32.totalorder %s21, 0
      %p156 = por %p154, %p155
      %p157 = scmp.ne.s32.totalorder %s146, %s149
      %p158 = scmp.eq.s32.totalorder %s26, 1
      %p159 = por %p157, %p158
      %p160 = scmp.ne.s32.totalorder %s149, %s150
      %p161 = scmp.eq.s32.totalorder %s26, 0
      %p162 = por %p160, %p161
      %p163 = scmp.ne.s32.totalorder %s149, %s150
      %p164 = scmp.eq.s32.totalorder %s27, 1
      %p165 = por %p163, %p164
      %p167 = scmp.ne.s32.totalorder %s150, %s166
      %p168 = scmp.eq.s32.totalorder %s27, 0
      %p169 = por %p167, %p168
      %p170 = scmp.le.s32.totalorder 1, %s21
      %p171 = scmp.lt.s32.totalorder %s21, 3
      %p172 = pnand %p170, %p171
      %p173 = pneg %p172
      // Predicated region
      $region9: #{tpu_custom_call.1} parent=5 // pred_check
        _
      $region10: #{tpu_custom_call.1} parent=5 // pred_check_branch
        %175 = sbr.rel (%p172) target = $region12
      $region11: #{tpu_custom_call.1} parent=5 // pred_region
        %s176 = ssub.s32 %s21, 1
        // Predicated region
        $region13: #{tpu_custom_call.1} parent=11 // pred_check
          %p177 = pneg %p94
        $region14: #{tpu_custom_call.1} parent=11 // pred_check_branch
          %179 = sbr.rel (%p177) target = $region16
        $region15: #{tpu_custom_call.1} parent=11 // pred_region
          %s181 = ssub.s32 8192, 8192
          %182 = vsyncadd [#allocation6], %s181
          %s183 = sshll.u32 [#allocation7], 4
          %s184 = int_to_ptr.vmem [resolvable:$true] %s183
          %189 = dma.hbm_to_vmem [thread:$0]  %s2, 8192, %s184, [#allocation6], 128, 128, 8
        $region16: #{tpu_custom_call.1} parent=11 // pred_fallthru
          _
        // Predicated region
        $region17: #{tpu_custom_call.1} parent=11 // pred_check
          %p190 = pneg %p115
        $region18: #{tpu_custom_call.1} parent=11 // pred_check_branch
          %192 = sbr.rel (%p190) target = $region20
        $region19: #{tpu_custom_call.1} parent=11 // pred_region
          %s194 = ssub.s32 8192, 8192
          %195 = vsyncadd [#allocation9], %s194
          %s196 = sshll.u32 [#allocation8], 4
          %s197 = int_to_ptr.vmem [resolvable:$true] %s196
          %202 = dma.hbm_to_vmem [thread:$0]  %s3, 8192, %s197, [#allocation9], 128, 128, 8
        $region20: #{tpu_custom_call.1} parent=11 // pred_fallthru
          _
        // Predicated region
        $region21: #{tpu_custom_call.1} parent=11 // pred_check
          %p203 = pneg %p136
        $region22: #{tpu_custom_call.1} parent=11 // pred_check_branch
          %205 = sbr.rel (%p203) target = $region24
        $region23: #{tpu_custom_call.1} parent=11 // pred_region
          _
        $region24: #{tpu_custom_call.1} parent=11 // pred_fallthru
          _
      $region12: #{tpu_custom_call.1} parent=5 // pred_fallthru
        _
      %p206 = scmp.lt.s32.totalorder %s21, 2
      // Predicated region
      $region25: #{tpu_custom_call.1} parent=5 // pred_check
        %p207 = pneg %p206
      $region26: #{tpu_custom_call.1} parent=5 // pred_check_branch
        %209 = sbr.rel (%p207) target = $region28
      $region27: #{tpu_custom_call.1} parent=5 // pred_region
        // Predicated region
        $region29: #{tpu_custom_call.1} parent=27 // pred_check
          %p210 = pneg %p41
        $region30: #{tpu_custom_call.1} parent=27 // pred_check_branch
          %212 = sbr.rel (%p210) target = $region32
        $region31: #{tpu_custom_call.1} parent=27 // pred_region
          %s213 = sand.u32 %s31, 1
          %s214 = scalar_lea.sflag [#allocation3], %s213
          %s215 = sand.u32 %s31, 1
          %s216 = smul.addr %s215, 64
          %s217 = scalar_lea.vmem [#allocation2], %s216
          %s218 = smul.u32 2, %s21
          %s219 = ssub.s32 3, %s218
          %p220 = scmp.lt.s32.totalorder %s219, 2
          %s221 = scalar_select %p220, %s219, 2
          %s222 = smul.u32 128, %s221
          %s223 = smul.u32 %s222, 4
          %s225 = ssub.s32 1024, %s223
          %226 = vsyncadd %s214, %s225
          %p227 = scmp.ne.s32.totalorder 0, %s223
          %s228 = smul.addr %s218, 32
          %s229 = smul.addr %s228, 128
          %s230 = scalar_lea.hbm %s0, %s229
          %s231 = smul.u32 32, %s221
          %s232 = sshll.u32 %s217, 4
          %s233 = int_to_ptr.vmem [resolvable:$true] %s232
          %s234 = sshll.u32 %s231, 4
          %238 = dma.hbm_to_vmem [thread:$0]  (%p227), %s230, %s234, %s233, %s214, 4096, 512, 32
        $region32: #{tpu_custom_call.1} parent=27 // pred_fallthru
          _
        // Predicated region
        $region33: #{tpu_custom_call.1} parent=27 // pred_check
          %p239 = pneg %p67
        $region34: #{tpu_custom_call.1} parent=27 // pred_check_branch
          %241 = sbr.rel (%p239) target = $region36
        $region35: #{tpu_custom_call.1} parent=27 // pred_region
          %s242 = sand.u32 %s21, 1
          %s243 = scalar_lea.sflag [#allocation6], %s242
          %s244 = sand.u32 %s57, 1
          %s245 = smul.addr %s244, 64
          %s246 = scalar_lea.vmem [#allocation5], %s245
          %s247 = smul.u32 2, %s21
          %s248 = ssub.s32 3, %s247
          %p249 = scmp.lt.s32.totalorder %s248, 2
          %s250 = scalar_select %p249, %s248, 2
          %s251 = smul.u32 128, %s250
          %s252 = smul.u32 %s251, 4
          %s254 = ssub.s32 1024, %s252
          %255 = vsyncadd %s243, %s254
          %p256 = scmp.ne.s32.totalorder 0, %s252
          %s257 = smul.addr %s247, 32
          %s258 = smul.addr %s257, 128
          %s259 = scalar_lea.hbm %s1, %s258
          %s260 = smul.u32 32, %s250
          %s261 = sshll.u32 %s246, 4
          %s262 = int_to_ptr.vmem [resolvable:$true] %s261
          %s263 = sshll.u32 %s260, 4
          %267 = dma.hbm_to_vmem [thread:$0]  (%p256), %s259, %s263, %s262, %s243, 4096, 512, 32
        $region36: #{tpu_custom_call.1} parent=27 // pred_fallthru
          _
      $region28: #{tpu_custom_call.1} parent=5 // pred_fallthru
        _
      %p268 = scmp.le.s32.totalorder 1, %s21
      %p269 = scmp.lt.s32.totalorder %s21, 3
      %p270 = pnand %p268, %p269
      %p271 = pneg %p270
      // Predicated region
      $region37: #{tpu_custom_call.1} parent=5 // pred_check
        _
      $region38: #{tpu_custom_call.1} parent=5 // pred_check_branch
        %273 = sbr.rel (%p270) target = $region40
      $region39: #{tpu_custom_call.1} parent=5 // pred_region
        %s274 = ssub.s32 %s21, 1
        %s275 = sand.u32 %s34, 1
        %s276 = scalar_lea.sflag [#allocation3], %s275
        %s277 = sand.u32 %s34, 1
        %s278 = smul.addr %s277, 64
        %s279 = scalar_lea.vmem [#allocation2], %s278
        // Predicated region
        $region41: #{tpu_custom_call.1} parent=39 // pred_check
          %p280 = pneg %p47
        $region42: #{tpu_custom_call.1} parent=39 // pred_check_branch
          %282 = sbr.rel (%p280) target = $region44
        $region43: #{tpu_custom_call.1} parent=39 // pred_region
          %283 = dma.done %s276, 1024
        $region44: #{tpu_custom_call.1} parent=39 // pred_fallthru
          _
        %s284 = sand.u32 %s26, 1
        %s285 = scalar_lea.sflag [#allocation6], %s284
        %s286 = sand.u32 %s60, 1
        %s287 = smul.addr %s286, 64
        %s288 = scalar_lea.vmem [#allocation5], %s287
        // Predicated region
        $region45: #{tpu_custom_call.1} parent=39 // pred_check
          %p289 = pneg %p73
        $region46: #{tpu_custom_call.1} parent=39 // pred_check_branch
          %291 = sbr.rel (%p289) target = $region48
        $region47: #{tpu_custom_call.1} parent=39 // pred_region
          %292 = dma.done %s285, 1024
        $region48: #{tpu_custom_call.1} parent=39 // pred_fallthru
          _
        // Predicated region
        $region49: #{tpu_custom_call.1} parent=39 // pred_check
          %p293 = pneg %p94
        $region50: #{tpu_custom_call.1} parent=39 // pred_check_branch
          %295 = sbr.rel (%p293) target = $region52
        $region51: #{tpu_custom_call.1} parent=39 // pred_region
          %296 = dma.done [#allocation6], 8192
        $region52: #{tpu_custom_call.1} parent=39 // pred_fallthru
          _
        // Predicated region
        $region53: #{tpu_custom_call.1} parent=39 // pred_check
          %p297 = pneg %p115
        $region54: #{tpu_custom_call.1} parent=39 // pred_check_branch
          %299 = sbr.rel (%p297) target = $region56
        $region55: #{tpu_custom_call.1} parent=39 // pred_region
          %300 = dma.done [#allocation9], 8192
        $region56: #{tpu_custom_call.1} parent=39 // pred_fallthru
          _
        %s301 = sand.u32 %s34, 1
        %s302 = scalar_lea.sflag [#allocation3], %s301
        %s303 = sand.u32 %s34, 1
        %s304 = smul.addr %s303, 64
        %s305 = scalar_lea.vmem [#allocation2], %s304
        %p306 = pneg %p47
        %p307 = pneg %p44
        %s308 = sand.u32 %s26, 1
        %s309 = scalar_lea.sflag [#allocation6], %s308
        %s310 = sand.u32 %s60, 1
        %s311 = smul.addr %s310, 64
        %s312 = scalar_lea.vmem [#allocation5], %s311
        %p313 = pneg %p73
        %p314 = pneg %p70
        %p315 = pneg %p94
        %p316 = pneg %p91
        %p317 = pneg %p115
        %p318 = pneg %p112
        %p319 = pneg %p136
        %p320 = pneg %p133
        %p321 = pneg %p162
        %p322 = pneg %p159
        %s323 = sand.u32 %s149, 1
        %s324 = scalar_lea.sflag [#allocation4], %s323
        %s325 = sand.u32 %s149, 1
        %s326 = smul.addr %s325, 16
        %s327 = scalar_lea.vmem [#allocation10], %s326
        %s328 = smul.u32 2, %s26
        %s329 = ssub.s32 3, %s328
        %p330 = scmp.lt.s32.totalorder %s329, 2
        %s331 = scalar_select %p330, %s329, 2
        %s332 = smul.u32 128, %s331
        %s333 = smul.u32 %s332, 4
        %s334 = smul.u32 2, %s26
        %s335 = ssub.s32 3, %s334
        %p336 = scmp.lt.s32.totalorder %s335, 2
        %s337 = scalar_select %p336, %s335, 2
        %s338 = smul.u32 128, %s337
        %s339 = smul.u32 %s338, 4
        %s340 = smul.u32 2, %s26
        %s341 = ssub.s32 3, %s340
        %p342 = scmp.lt.s32.totalorder %s341, 2
        %s343 = scalar_select %p342, %s341, 2
        %s344 = smul.u32 128, %s343
        %v345 = vld [vmem:[%s279] sm:$0xff]
        %v346 = vld [vmem:[%s279 + $0x8] sm:$0xff]
        %v347 = vld [vmem:[%s279 + $0x10] sm:$0xff]
        %v348 = vld [vmem:[%s279 + $0x18] sm:$0xff]
        %v349 = vld [vmem:[%s279 + $0x20] sm:$0xff]
        %v350 = vld [vmem:[%s279 + $0x28] sm:$0xff]
        %v351 = vld [vmem:[%s279 + $0x30] sm:$0xff]
        %v352 = vld [vmem:[%s279 + $0x38] sm:$0xff]
        %v353 = vld [vmem:[#allocation7] sm:$0xff]
        %v354 = vld [vmem:[#allocation7 + $0x8] sm:$0xff]
        %v355 = vld [vmem:[#allocation7 + $0x10] sm:$0xff]
        %v356 = vld [vmem:[#allocation7 + $0x18] sm:$0xff]
        %v357 = vld [vmem:[#allocation7 + $0x20] sm:$0xff]
        %v358 = vld [vmem:[#allocation7 + $0x28] sm:$0xff]
        %v359 = vld [vmem:[#allocation7 + $0x30] sm:$0xff]
        %v360 = vld [vmem:[#allocation7 + $0x38] sm:$0xff]
        %v361 = vld [vmem:[#allocation7 + $0x40] sm:$0xff]
        %v362 = vld [vmem:[#allocation7 + $0x48] sm:$0xff]
        %v363 = vld [vmem:[#allocation7 + $0x50] sm:$0xff]
        %v364 = vld [vmem:[#allocation7 + $0x58] sm:$0xff]
        %v365 = vld [vmem:[#allocation7 + $0x60] sm:$0xff]
        %v366 = vld [vmem:[#allocation7 + $0x68] sm:$0xff]
        %v367 = vld [vmem:[#allocation7 + $0x70] sm:$0xff]
        %v368 = vld [vmem:[#allocation7 + $0x78] sm:$0xff]
        %v369 = vld [vmem:[#allocation7 + $0x80] sm:$0xff]
        %v370 = vld [vmem:[#allocation7 + $0x88] sm:$0xff]
        %v371 = vld [vmem:[#allocation7 + $0x90] sm:$0xff]
        %v372 = vld [vmem:[#allocation7 + $0x98] sm:$0xff]
        %v373 = vld [vmem:[#allocation7 + $0xa0] sm:$0xff]
        %v374 = vld [vmem:[#allocation7 + $0xa8] sm:$0xff]
        %v375 = vld [vmem:[#allocation7 + $0xb0] sm:$0xff]
        %v376 = vld [vmem:[#allocation7 + $0xb8] sm:$0xff]
        %v377 = vld [vmem:[#allocation7 + $0xc0] sm:$0xff]
        %v378 = vld [vmem:[#allocation7 + $0xc8] sm:$0xff]
        %v379 = vld [vmem:[#allocation7 + $0xd0] sm:$0xff]
        %v380 = vld [vmem:[#allocation7 + $0xd8] sm:$0xff]
        %v381 = vld [vmem:[#allocation7 + $0xe0] sm:$0xff]
        %v382 = vld [vmem:[#allocation7 + $0xe8] sm:$0xff]
        %v383 = vld [vmem:[#allocation7 + $0xf0] sm:$0xff]
        %v384 = vld [vmem:[#allocation7 + $0xf8] sm:$0xff]
        %v385 = vld [vmem:[#allocation7 + $0x100] sm:$0xff]
        %v386 = vld [vmem:[#allocation7 + $0x108] sm:$0xff]
        %v387 = vld [vmem:[#allocation7 + $0x110] sm:$0xff]
        %v388 = vld [vmem:[#allocation7 + $0x118] sm:$0xff]
        %v389 = vld [vmem:[#allocation7 + $0x120] sm:$0xff]
        %v390 = vld [vmem:[#allocation7 + $0x128] sm:$0xff]
        %v391 = vld [vmem:[#allocation7 + $0x130] sm:$0xff]
        %v392 = vld [vmem:[#allocation7 + $0x138] sm:$0xff]
        %v393 = vld [vmem:[#allocation7 + $0x140] sm:$0xff]
        %v394 = vld [vmem:[#allocation7 + $0x148] sm:$0xff]
        %v395 = vld [vmem:[#allocation7 + $0x150] sm:$0xff]
        %v396 = vld [vmem:[#allocation7 + $0x158] sm:$0xff]
        %v397 = vld [vmem:[#allocation7 + $0x160] sm:$0xff]
        %v398 = vld [vmem:[#allocation7 + $0x168] sm:$0xff]
        %v399 = vld [vmem:[#allocation7 + $0x170] sm:$0xff]
        %v400 = vld [vmem:[#allocation7 + $0x178] sm:$0xff]
        %v401 = vld [vmem:[#allocation7 + $0x180] sm:$0xff]
        %v402 = vld [vmem:[#allocation7 + $0x188] sm:$0xff]
        %v403 = vld [vmem:[#allocation7 + $0x190] sm:$0xff]
        %v404 = vld [vmem:[#allocation7 + $0x198] sm:$0xff]
        %v405 = vld [vmem:[#allocation7 + $0x1a0] sm:$0xff]
        %v406 = vld [vmem:[#allocation7 + $0x1a8] sm:$0xff]
        %v407 = vld [vmem:[#allocation7 + $0x1b0] sm:$0xff]
        %v408 = vld [vmem:[#allocation7 + $0x1b8] sm:$0xff]
        %v409 = vld [vmem:[#allocation7 + $0x1c0] sm:$0xff]
        %v410 = vld [vmem:[#allocation7 + $0x1c8] sm:$0xff]
        %v411 = vld [vmem:[#allocation7 + $0x1d0] sm:$0xff]
        %v412 = vld [vmem:[#allocation7 + $0x1d8] sm:$0xff]
        %v413 = vld [vmem:[#allocation7 + $0x1e0] sm:$0xff]
        %v414 = vld [vmem:[#allocation7 + $0x1e8] sm:$0xff]
        %v415 = vld [vmem:[#allocation7 + $0x1f0] sm:$0xff]
        %v416 = vld [vmem:[#allocation7 + $0x1f8] sm:$0xff]
        %v417 = vld [vmem:[%s288] sm:$0xff]
        %v418 = vld [vmem:[%s288 + $0x8] sm:$0xff]
        %v419 = vld [vmem:[%s288 + $0x10] sm:$0xff]
        %v420 = vld [vmem:[%s288 + $0x18] sm:$0xff]
        %v421 = vld [vmem:[%s288 + $0x20] sm:$0xff]
        %v422 = vld [vmem:[%s288 + $0x28] sm:$0xff]
        %v423 = vld [vmem:[%s288 + $0x30] sm:$0xff]
        %v424 = vld [vmem:[%s288 + $0x38] sm:$0xff]
        %v425 = vld [vmem:[#allocation8] sm:$0xff]
        %v426 = vld [vmem:[#allocation8 + $0x8] sm:$0xff]
        %v427 = vld [vmem:[#allocation8 + $0x10] sm:$0xff]
        %v428 = vld [vmem:[#allocation8 + $0x18] sm:$0xff]
        %v429 = vld [vmem:[#allocation8 + $0x20] sm:$0xff]
        %v430 = vld [vmem:[#allocation8 + $0x28] sm:$0xff]
        %v431 = vld [vmem:[#allocation8 + $0x30] sm:$0xff]
        %v432 = vld [vmem:[#allocation8 + $0x38] sm:$0xff]
        %v433 = vld [vmem:[#allocation8 + $0x40] sm:$0xff]
        %v434 = vld [vmem:[#allocation8 + $0x48] sm:$0xff]
        %v435 = vld [vmem:[#allocation8 + $0x50] sm:$0xff]
        %v436 = vld [vmem:[#allocation8 + $0x58] sm:$0xff]
        %v437 = vld [vmem:[#allocation8 + $0x60] sm:$0xff]
        %v438 = vld [vmem:[#allocation8 + $0x68] sm:$0xff]
        %v439 = vld [vmem:[#allocation8 + $0x70] sm:$0xff]
        %v440 = vld [vmem:[#allocation8 + $0x78] sm:$0xff]
        %v441 = vld [vmem:[#allocation8 + $0x80] sm:$0xff]
        %v442 = vld [vmem:[#allocation8 + $0x88] sm:$0xff]
        %v443 = vld [vmem:[#allocation8 + $0x90] sm:$0xff]
        %v444 = vld [vmem:[#allocation8 + $0x98] sm:$0xff]
        %v445 = vld [vmem:[#allocation8 + $0xa0] sm:$0xff]
        %v446 = vld [vmem:[#allocation8 + $0xa8] sm:$0xff]
        %v447 = vld [vmem:[#allocation8 + $0xb0] sm:$0xff]
        %v448 = vld [vmem:[#allocation8 + $0xb8] sm:$0xff]
        %v449 = vld [vmem:[#allocation8 + $0xc0] sm:$0xff]
        %v450 = vld [vmem:[#allocation8 + $0xc8] sm:$0xff]
        %v451 = vld [vmem:[#allocation8 + $0xd0] sm:$0xff]
        %v452 = vld [vmem:[#allocation8 + $0xd8] sm:$0xff]
        %v453 = vld [vmem:[#allocation8 + $0xe0] sm:$0xff]
        %v454 = vld [vmem:[#allocation8 + $0xe8] sm:$0xff]
        %v455 = vld [vmem:[#allocation8 + $0xf0] sm:$0xff]
        %v456 = vld [vmem:[#allocation8 + $0xf8] sm:$0xff]
        %v457 = vld [vmem:[#allocation8 + $0x100] sm:$0xff]
        %v458 = vld [vmem:[#allocation8 + $0x108] sm:$0xff]
        %v459 = vld [vmem:[#allocation8 + $0x110] sm:$0xff]
        %v460 = vld [vmem:[#allocation8 + $0x118] sm:$0xff]
        %v461 = vld [vmem:[#allocation8 + $0x120] sm:$0xff]
        %v462 = vld [vmem:[#allocation8 + $0x128] sm:$0xff]
        %v463 = vld [vmem:[#allocation8 + $0x130] sm:$0xff]
        %v464 = vld [vmem:[#allocation8 + $0x138] sm:$0xff]
        %v465 = vld [vmem:[#allocation8 + $0x140] sm:$0xff]
        %v466 = vld [vmem:[#allocation8 + $0x148] sm:$0xff]
        %v467 = vld [vmem:[#allocation8 + $0x150] sm:$0xff]
        %v468 = vld [vmem:[#allocation8 + $0x158] sm:$0xff]
        %v469 = vld [vmem:[#allocation8 + $0x160] sm:$0xff]
        %v470 = vld [vmem:[#allocation8 + $0x168] sm:$0xff]
        %v471 = vld [vmem:[#allocation8 + $0x170] sm:$0xff]
        %v472 = vld [vmem:[#allocation8 + $0x178] sm:$0xff]
        %v473 = vld [vmem:[#allocation8 + $0x180] sm:$0xff]
        %v474 = vld [vmem:[#allocation8 + $0x188] sm:$0xff]
        %v475 = vld [vmem:[#allocation8 + $0x190] sm:$0xff]
        %v476 = vld [vmem:[#allocation8 + $0x198] sm:$0xff]
        %v477 = vld [vmem:[#allocation8 + $0x1a0] sm:$0xff]
        %v478 = vld [vmem:[#allocation8 + $0x1a8] sm:$0xff]
        %v479 = vld [vmem:[#allocation8 + $0x1b0] sm:$0xff]
        %v480 = vld [vmem:[#allocation8 + $0x1b8] sm:$0xff]
        %v481 = vld [vmem:[#allocation8 + $0x1c0] sm:$0xff]
        %v482 = vld [vmem:[#allocation8 + $0x1c8] sm:$0xff]
        %v483 = vld [vmem:[#allocation8 + $0x1d0] sm:$0xff]
        %v484 = vld [vmem:[#allocation8 + $0x1d8] sm:$0xff]
        %v485 = vld [vmem:[#allocation8 + $0x1e0] sm:$0xff]
        %v486 = vld [vmem:[#allocation8 + $0x1e8] sm:$0xff]
        %v487 = vld [vmem:[#allocation8 + $0x1f0] sm:$0xff]
        %v488 = vld [vmem:[#allocation8 + $0x1f8] sm:$0xff]
        %489 = vmatprep.subr.mxu0 0.0
        %490 = vmatpush1.msra.mxu0 %v425
        %491 = vmatprep.subr.mxu0 0.0
        %492 = vmatpush1.msra.mxu0 %v426
        %493 = vmatprep.subr.mxu0 0.0
        %494 = vmatpush1.msra.mxu0 %v427
        %495 = vmatprep.subr.mxu0 0.0
        %496 = vmatpush1.msra.mxu0 %v428
        %497 = vmatprep.subr.mxu0 0.0
        %498 = vmatpush1.msra.mxu0 %v429
        %499 = vmatprep.subr.mxu0 0.0
        %500 = vmatpush1.msra.mxu0 %v430
        %501 = vmatprep.subr.mxu0 0.0
        %502 = vmatpush1.msra.mxu0 %v431
        %503 = vmatprep.subr.mxu0 0.0
        %504 = vmatpush1.msra.mxu0 %v432
        %505 = vmatprep.subr.mxu0 0.0
        %506 = vmatpush1.msra.mxu0 %v433
        %507 = vmatprep.subr.mxu0 0.0
        %508 = vmatpush1.msra.mxu0 %v434
        %509 = vmatprep.subr.mxu0 0.0
        %510 = vmatpush1.msra.mxu0 %v435
        %511 = vmatprep.subr.mxu0 0.0
        %512 = vmatpush1.msra.mxu0 %v436
        %513 = vmatprep.subr.mxu0 0.0
        %514 = vmatpush1.msra.mxu0 %v437
        %515 = vmatprep.subr.mxu0 0.0
        %516 = vmatpush1.msra.mxu0 %v438
        %517 = vmatprep.subr.mxu0 0.0
        %518 = vmatpush1.msra.mxu0 %v439
        %519 = vmatprep.subr.mxu0 0.0
        %520 = vmatpush1.msra.mxu0 %v440
        %521 = vmatprep.subr.mxu0 0.0
        %522 = vmatpush1.msra.mxu0 %v441
        %523 = vmatprep.subr.mxu0 0.0
        %524 = vmatpush1.msra.mxu0 %v442
        %525 = vmatprep.subr.mxu0 0.0
        %526 = vmatpush1.msra.mxu0 %v443
        %527 = vmatprep.subr.mxu0 0.0
        %528 = vmatpush1.msra.mxu0 %v444
        %529 = vmatprep.subr.mxu0 0.0
        %530 = vmatpush1.msra.mxu0 %v445
        %531 = vmatprep.subr.mxu0 0.0
        %532 = vmatpush1.msra.mxu0 %v446
        %533 = vmatprep.subr.mxu0 0.0
        %534 = vmatpush1.msra.mxu0 %v447
        %535 = vmatprep.subr.mxu0 0.0
        %536 = vmatpush1.msra.mxu0 %v448
        %537 = vmatprep.subr.mxu0 0.0
        %538 = vmatpush1.msra.mxu0 %v449
        %539 = vmatprep.subr.mxu0 0.0
        %540 = vmatpush1.msra.mxu0 %v450
        %541 = vmatprep.subr.mxu0 0.0
        %542 = vmatpush1.msra.mxu0 %v451
        %543 = vmatprep.subr.mxu0 0.0
        %544 = vmatpush1.msra.mxu0 %v452
        %545 = vmatprep.subr.mxu0 0.0
        %546 = vmatpush1.msra.mxu0 %v453
        %547 = vmatprep.subr.mxu0 0.0
        %548 = vmatpush1.msra.mxu0 %v454
        %549 = vmatprep.subr.mxu0 0.0
        %550 = vmatpush1.msra.mxu0 %v455
        %551 = vmatprep.subr.mxu0 0.0
        %552 = vmatpush1.msra.mxu0 %v456
        %553 = vmatprep.mubr.f32.mxu0 %v418
        %554 = vmatmul.mubr.f32.gmra.mrb[0].mxu0 %v417
        %v555 = vpop.f32.mrb[0].mxu0
        %v556 = vadd.f32 0.0, %v555
        %v557 = vpop.f32.mrb[0].mxu0
        %558 = vmatprep.mubr.f32.mxu0 %v422
        %559 = vmatmul.mubr.f32.gmra.mrb[0].mxu0 %v421
        %v560 = vpop.f32.mrb[0].mxu0
        %v561 = vadd.f32 0.0, %v560
        %v562 = vpop.f32.mrb[0].mxu0
        %563 = vdwg.mxu0
        %564 = vmatprep.subr.mxu0 0.0
        %565 = vmatpush1.msra.mxu0 %v457
        %566 = vmatprep.subr.mxu0 0.0
        %567 = vmatpush1.msra.mxu0 %v458
        %568 = vmatprep.subr.mxu0 0.0
        %569 = vmatpush1.msra.mxu0 %v459
        %570 = vmatprep.subr.mxu0 0.0
        %571 = vmatpush1.msra.mxu0 %v460
        %572 = vmatprep.subr.mxu0 0.0
        %573 = vmatpush1.msra.mxu0 %v461
        %574 = vmatprep.subr.mxu0 0.0
        %575 = vmatpush1.msra.mxu0 %v462
        %576 = vmatprep.subr.mxu0 0.0
        %577 = vmatpush1.msra.mxu0 %v463
        %578 = vmatprep.subr.mxu0 0.0
        %579 = vmatpush1.msra.mxu0 %v464
        %580 = vmatprep.subr.mxu0 0.0
        %581 = vmatpush1.msra.mxu0 %v465
        %582 = vmatprep.subr.mxu0 0.0
        %583 = vmatpush1.msra.mxu0 %v466
        %584 = vmatprep.subr.mxu0 0.0
        %585 = vmatpush1.msra.mxu0 %v467
        %586 = vmatprep.subr.mxu0 0.0
        %587 = vmatpush1.msra.mxu0 %v468
        %588 = vmatprep.subr.mxu0 0.0
        %589 = vmatpush1.msra.mxu0 %v469
        %590 = vmatprep.subr.mxu0 0.0
        %591 = vmatpush1.msra.mxu0 %v470
        %592 = vmatprep.subr.mxu0 0.0
        %593 = vmatpush1.msra.mxu0 %v471
        %594 = vmatprep.subr.mxu0 0.0
        %595 = vmatpush1.msra.mxu0 %v472
        %596 = vmatprep.subr.mxu0 0.0
        %597 = vmatpush1.msra.mxu0 %v473
        %598 = vmatprep.subr.mxu0 0.0
        %599 = vmatpush1.msra.mxu0 %v474
        %600 = vmatprep.subr.mxu0 0.0
        %601 = vmatpush1.msra.mxu0 %v475
        %602 = vmatprep.subr.mxu0 0.0
        %603 = vmatpush1.msra.mxu0 %v476
        %604 = vmatprep.subr.mxu0 0.0
        %605 = vmatpush1.msra.mxu0 %v477
        %606 = vmatprep.subr.mxu0 0.0
        %607 = vmatpush1.msra.mxu0 %v478
        %608 = vmatprep.subr.mxu0 0.0
        %609 = vmatpush1.msra.mxu0 %v479
        %610 = vmatprep.subr.mxu0 0.0
        %611 = vmatpush1.msra.mxu0 %v480
        %612 = vmatprep.subr.mxu0 0.0
        %613 = vmatpush1.msra.mxu0 %v481
        %614 = vmatprep.subr.mxu0 0.0
        %615 = vmatpush1.msra.mxu0 %v482
        %616 = vmatprep.subr.mxu0 0.0
        %617 = vmatpush1.msra.mxu0 %v483
        %618 = vmatprep.subr.mxu0 0.0
        %619 = vmatpush1.msra.mxu0 %v484
        %620 = vmatprep.subr.mxu0 0.0
        %621 = vmatpush1.msra.mxu0 %v485
        %622 = vmatprep.subr.mxu0 0.0
        %623 = vmatpush1.msra.mxu0 %v486
        %624 = vmatprep.subr.mxu0 0.0
        %625 = vmatpush1.msra.mxu0 %v487
        %626 = vmatprep.subr.mxu0 0.0
        %627 = vmatpush1.msra.mxu0 %v488
        %628 = vmatprep.mubr.f32.mxu0 %v420
        %629 = vmatmul.mubr.f32.gmra.mrb[0].mxu0 %v419
        %v630 = vpop.f32.mrb[0].mxu0
        %v631 = vadd.f32 %v556, %v630
        %v632 = vpop.f32.mrb[0].mxu0
        %633 = vmatprep.mubr.f32.mxu0 %v424
        %634 = vmatmul.mubr.f32.gmra.mrb[0].mxu0 %v423
        %v635 = vpop.f32.mrb[0].mxu0
        %v636 = vadd.f32 %v561, %v635
        %v637 = vpop.f32.mrb[0].mxu0
        %638 = vdwg.mxu0
        %639 = vmatprep.subr.mxu0 0.0
        %640 = vmatpush1.msra.mxu0 %v353
        %641 = vmatprep.subr.mxu0 0.0
        %642 = vmatpush1.msra.mxu0 %v354
        %643 = vmatprep.subr.mxu0 0.0
        %644 = vmatpush1.msra.mxu0 %v355
        %645 = vmatprep.subr.mxu0 0.0
        %646 = vmatpush1.msra.mxu0 %v356
        %647 = vmatprep.subr.mxu0 0.0
        %648 = vmatpush1.msra.mxu0 %v357
        %649 = vmatprep.subr.mxu0 0.0
        %650 = vmatpush1.msra.mxu0 %v358
        %651 = vmatprep.subr.mxu0 0.0
        %652 = vmatpush1.msra.mxu0 %v359
        %653 = vmatprep.subr.mxu0 0.0
        %654 = vmatpush1.msra.mxu0 %v360
        %655 = vmatprep.subr.mxu0 0.0
        %656 = vmatpush1.msra.mxu0 %v361
        %657 = vmatprep.subr.mxu0 0.0
        %658 = vmatpush1.msra.mxu0 %v362
        %659 = vmatprep.subr.mxu0 0.0
        %660 = vmatpush1.msra.mxu0 %v363
        %661 = vmatprep.subr.mxu0 0.0
        %662 = vmatpush1.msra.mxu0 %v364
        %663 = vmatprep.subr.mxu0 0.0
        %664 = vmatpush1.msra.mxu0 %v365
        %665 = vmatprep.subr.mxu0 0.0
        %666 = vmatpush1.msra.mxu0 %v366
        %667 = vmatprep.subr.mxu0 0.0
        %668 = vmatpush1.msra.mxu0 %v367
        %669 = vmatprep.subr.mxu0 0.0
        %670 = vmatpush1.msra.mxu0 %v368
        %671 = vmatprep.subr.mxu0 0.0
        %672 = vmatpush1.msra.mxu0 %v369
        %673 = vmatprep.subr.mxu0 0.0
        %674 = vmatpush1.msra.mxu0 %v370
        %675 = vmatprep.subr.mxu0 0.0
        %676 = vmatpush1.msra.mxu0 %v371
        %677 = vmatprep.subr.mxu0 0.0
        %678 = vmatpush1.msra.mxu0 %v372
        %679 = vmatprep.subr.mxu0 0.0
        %680 = vmatpush1.msra.mxu0 %v373
        %681 = vmatprep.subr.mxu0 0.0
        %682 = vmatpush1.msra.mxu0 %v374
        %683 = vmatprep.subr.mxu0 0.0
        %684 = vmatpush1.msra.mxu0 %v375
        %685 = vmatprep.subr.mxu0 0.0
        %686 = vmatpush1.msra.mxu0 %v376
        %687 = vmatprep.subr.mxu0 0.0
        %688 = vmatpush1.msra.mxu0 %v377
        %689 = vmatprep.subr.mxu0 0.0
        %690 = vmatpush1.msra.mxu0 %v378
        %691 = vmatprep.subr.mxu0 0.0
        %692 = vmatpush1.msra.mxu0 %v379
        %693 = vmatprep.subr.mxu0 0.0
        %694 = vmatpush1.msra.mxu0 %v380
        %695 = vmatprep.subr.mxu0 0.0
        %696 = vmatpush1.msra.mxu0 %v381
        %697 = vmatprep.subr.mxu0 0.0
        %698 = vmatpush1.msra.mxu0 %v382
        %699 = vmatprep.subr.mxu0 0.0
        %700 = vmatpush1.msra.mxu0 %v383
        %701 = vmatprep.subr.mxu0 0.0
        %702 = vmatpush1.msra.mxu0 %v384
        %703 = vmatprep.mubr.f32.mxu0 %v346
        %704 = vmatmul.mubr.f32.gmra.mrb[0].mxu0 %v345
        %v705 = vpop.f32.mrb[0].mxu0
        %v706 = vadd.f32 %v631, %v705
        %v707 = vpop.f32.mrb[0].mxu0
        %708 = vmatprep.mubr.f32.mxu0 %v350
        %709 = vmatmul.mubr.f32.gmra.mrb[0].mxu0 %v349
        %v710 = vpop.f32.mrb[0].mxu0
        %v711 = vadd.f32 %v636, %v710
        %v712 = vpop.f32.mrb[0].mxu0
        %713 = vdwg.mxu0
        %714 = vmatprep.subr.mxu0 0.0
        %715 = vmatpush1.msra.mxu0 %v385
        %716 = vmatprep.subr.mxu0 0.0
        %717 = vmatpush1.msra.mxu0 %v386
        %718 = vmatprep.subr.mxu0 0.0
        %719 = vmatpush1.msra.mxu0 %v387
        %720 = vmatprep.subr.mxu0 0.0
        %721 = vmatpush1.msra.mxu0 %v388
        %722 = vmatprep.subr.mxu0 0.0
        %723 = vmatpush1.msra.mxu0 %v389
        %724 = vmatprep.subr.mxu0 0.0
        %725 = vmatpush1.msra.mxu0 %v390
        %726 = vmatprep.subr.mxu0 0.0
        %727 = vmatpush1.msra.mxu0 %v391
        %728 = vmatprep.subr.mxu0 0.0
        %729 = vmatpush1.msra.mxu0 %v392
        %730 = vmatprep.subr.mxu0 0.0
        %731 = vmatpush1.msra.mxu0 %v393
        %732 = vmatprep.subr.mxu0 0.0
        %733 = vmatpush1.msra.mxu0 %v394
        %734 = vmatprep.subr.mxu0 0.0
        %735 = vmatpush1.msra.mxu0 %v395
        %736 = vmatprep.subr.mxu0 0.0
        %737 = vmatpush1.msra.mxu0 %v396
        %738 = vmatprep.subr.mxu0 0.0
        %739 = vmatpush1.msra.mxu0 %v397
        %740 = vmatprep.subr.mxu0 0.0
        %741 = vmatpush1.msra.mxu0 %v398
        %742 = vmatprep.subr.mxu0 0.0
        %743 = vmatpush1.msra.mxu0 %v399
        %744 = vmatprep.subr.mxu0 0.0
        %745 = vmatpush1.msra.mxu0 %v400
        %746 = vmatprep.subr.mxu0 0.0
        %747 = vmatpush1.msra.mxu0 %v401
        %748 = vmatprep.subr.mxu0 0.0
        %749 = vmatpush1.msra.mxu0 %v402
        %750 = vmatprep.subr.mxu0 0.0
        %751 = vmatpush1.msra.mxu0 %v403
        %752 = vmatprep.subr.mxu0 0.0
        %753 = vmatpush1.msra.mxu0 %v404
        %754 = vmatprep.subr.mxu0 0.0
        %755 = vmatpush1.msra.mxu0 %v405
        %756 = vmatprep.subr.mxu0 0.0
        %757 = vmatpush1.msra.mxu0 %v406
        %758 = vmatprep.subr.mxu0 0.0
        %759 = vmatpush1.msra.mxu0 %v407
        %760 = vmatprep.subr.mxu0 0.0
        %761 = vmatpush1.msra.mxu0 %v408
        %762 = vmatprep.subr.mxu0 0.0
        %763 = vmatpush1.msra.mxu0 %v409
        %764 = vmatprep.subr.mxu0 0.0
        %765 = vmatpush1.msra.mxu0 %v410
        %766 = vmatprep.subr.mxu0 0.0
        %767 = vmatpush1.msra.mxu0 %v411
        %768 = vmatprep.subr.mxu0 0.0
        %769 = vmatpush1.msra.mxu0 %v412
        %770 = vmatprep.subr.mxu0 0.0
        %771 = vmatpush1.msra.mxu0 %v413
        %772 = vmatprep.subr.mxu0 0.0
        %773 = vmatpush1.msra.mxu0 %v414
        %774 = vmatprep.subr.mxu0 0.0
        %775 = vmatpush1.msra.mxu0 %v415
        %776 = vmatprep.subr.mxu0 0.0
        %777 = vmatpush1.msra.mxu0 %v416
        %778 = vmatprep.mubr.f32.mxu0 %v348
        %779 = vmatmul.mubr.f32.gmra.mrb[0].mxu0 %v347
        %v780 = vpop.f32.mrb[0].mxu0
        %v781 = vadd.f32 %v706, %v780
        %v782 = vpop.f32.mrb[0].mxu0
        %783 = vmatprep.mubr.f32.mxu0 %v352
        %784 = vmatmul.mubr.f32.gmra.mrb[0].mxu0 %v351
        %v785 = vpop.f32.mrb[0].mxu0
        %v786 = vadd.f32 %v711, %v785
        %v787 = vpop.f32.mrb[0].mxu0
        %788 = vdwg.mxu0
        %v789 = vld [vmem:[%s4] sm:$0x1]
        %v791 = vlaneseq
        %v792 = vshrl.u32 %v791, 7
        %v793 = vsub.s32 0, %v792
        %v794 = vrot.slane %v789, %v793
        %v796 = vadd.f32 %v781, %v794
        %v797 = vadd.f32 %v786, %v794
        %798 = vst [vmem:[%s327] sm:$0xff] %v796
        %799 = vst [vmem:[%s327 + $0x8] sm:$0xff] %v797
        %s800 = sand.u32 %s149, 1
        %s801 = scalar_lea.sflag [#allocation4], %s800
        %s802 = sand.u32 %s149, 1
        %s803 = smul.addr %s802, 16
        %s804 = scalar_lea.vmem [#allocation10], %s803
        // Predicated region
        $region57: #{tpu_custom_call.1} parent=39 // pred_check
          %p805 = pneg %p159
        $region58: #{tpu_custom_call.1} parent=39 // pred_check_branch
          %807 = sbr.rel (%p805) target = $region60
        $region59: #{tpu_custom_call.1} parent=39 // pred_region
          %s808 = smul.u32 2, %s26
          %s809 = ssub.s32 3, %s808
          %p810 = scmp.lt.s32.totalorder %s809, 2
          %s811 = scalar_select %p810, %s809, 2
          %s812 = smul.u32 128, %s811
          %s814 = ssub.s32 256, %s812
          %815 = vsyncadd %s801, %s814
          %p816 = scmp.ne.s32.totalorder 0, %s812
          %s817 = smul.addr %s808, 128
          %s818 = scalar_lea.hbm %s5, %s817
          %s819 = smul.u32 8, %s811
          %s820 = sshll.u32 %s804, 4
          %s821 = int_to_ptr.vmem [resolvable:$true] %s820
          %s822 = sshll.u32 %s819, 4
          %826 = dma.vmem_to_hbm [thread:$0]  (%p816), %s821, %s822, %s818, %s801, 128, 128, 8
        $region60: #{tpu_custom_call.1} parent=39 // pred_fallthru
          _
      $region40: #{tpu_custom_call.1} parent=5 // pred_fallthru
        _
      %p827 = scmp.le.s32.totalorder 2, %s21
      // Predicated region
      $region61: #{tpu_custom_call.1} parent=5 // pred_check
        %p828 = pneg %p827
      $region62: #{tpu_custom_call.1} parent=5 // pred_check_branch
        %830 = sbr.rel (%p828) target = $region64
      $region63: #{tpu_custom_call.1} parent=5 // pred_region
        %s831 = ssub.s32 %s21, 2
        // Predicated region
        $region65: #{tpu_custom_call.1} parent=63 // pred_check
          %p832 = pneg %p165
        $region66: #{tpu_custom_call.1} parent=63 // pred_check_branch
          %834 = sbr.rel (%p832) target = $region68
        $region67: #{tpu_custom_call.1} parent=63 // pred_region
          %s835 = sand.u32 %s150, 1
          %s836 = scalar_lea.sflag [#allocation4], %s835
          %s837 = sand.u32 %s150, 1
          %s838 = smul.addr %s837, 16
          %s839 = scalar_lea.vmem [#allocation10], %s838
          %840 = dma.done %s836, 256
        $region68: #{tpu_custom_call.1} parent=63 // pred_fallthru
          _
      $region64: #{tpu_custom_call.1} parent=5 // pred_fallthru
        _
    $region6: #{tpu_custom_call.1} parent=1 // loop_footer
      %s25 = sadd.s32 1, %s21
    $region7: #{tpu_custom_call.1} parent=1 // loop_footer_branch
      %20 = sbr.rel target = $region3
    $region8: #{tpu_custom_call.1} parent=1 // loop_exit
      _
    %841 = vsyncpa [#allocation3], 1
    %s842 = scalar_lea.sflag [#allocation3], 1
    %843 = vsyncpa %s842, 1
    %844 = vsyncpa [#allocation6], 1
    %s845 = scalar_lea.sflag [#allocation6], 1
    %846 = vsyncpa %s845, 1
    %847 = vsyncpa [#allocation9], 1
    %848 = vsyncpa [#allocation4], 1
    %s849 = scalar_lea.sflag [#allocation4], 1
    %850 = vsyncpa %s849, 1

</llo_original>
